<compile_context>
chip_gen: v5e
topology: v5e:2x2
jax: 0.10.0
libtpu: 0.0.40
codegen_flags: <defaults>
</compile_context>

<pallas_src>
import jax
import jax.numpy as jnp
from jax.experimental import pallas as pl
from jax.experimental.pallas import tpu as pltpu

NEG_SLOPE = 0.02
HIDDEN = 20
LANE = 128      # lane width of a vreg
SUBLANE = 8     # f32 sublane granularity
MAX_TB = 256    # M-tile: full MXU height on v6e/v7x


def _leaky_relu(x, slope=NEG_SLOPE):
    return jnp.where(x >= 0, x, slope * x)


def _round_up(n, m):
    return (n + m - 1) // m * m


def mlp_kernel(x_ref, w1_ref, b1_ref, w2_ref, b2_ref, w3_ref, b3_ref, o_ref):
    # One batch tile (TB, input_n) -> (TB, out_pad); all three layers fused.
    # Feature dims are pre-padded to 128 lanes, so every dot/add/store is a
    # full-vreg op and the final store is an unmasked lane-dense `vst`.
    x = x_ref[...]  # (TB, input_n) f32

    h1 = jnp.dot(x, w1_ref[...], preferred_element_type=jnp.float32) + b1_ref[...]
    h1 = _leaky_relu(h1)

    h2 = jnp.dot(h1, w2_ref[...], preferred_element_type=jnp.float32) + b2_ref[...]
    h2 = _leaky_relu(h2)

    h3 = jnp.dot(h2, w3_ref[...], preferred_element_type=jnp.float32) + b3_ref[...]
    o_ref[...] = h3.astype(o_ref.dtype)


def pad_params(params):
    """Zero-pad lane dims (hidden 20 -> 128, output_n -> 128) once, outside the
    hot path. Zero padding is exact: padded hidden columns stay zero through
    LeakyReLU, and padded W rows contribute nothing to the next matmul."""
    w1, b1, w2, b2, w3, b3 = params
    input_n = w1.shape[0]
    output_n = w3.shape[1]
    h_pad = _round_up(HIDDEN, LANE)
    out_pad = _round_up(output_n, LANE)

    def pad2(a, shape):
        a = jnp.asarray(a, jnp.float32).reshape((-1, a.shape[-1]))
        return jnp.pad(a, [(0, s - d) for d, s in zip(a.shape, shape)])

    w1p = pad2(w1, (input_n, h_pad))
    b1p = pad2(b1, (1, h_pad))
    w2p = pad2(w2, (h_pad, h_pad))
    b2p = pad2(b2, (1, h_pad))
    w3p = pad2(w3, (h_pad, out_pad))
    b3p = pad2(b3, (1, out_pad))
    return (w1p, b1p, w2p, b2p, w3p, b3p)


def network_forward(x, padded_params, output_n):
    """x: (B, input_n) any float dtype; padded_params from `pad_params`.
    Returns (B, output_n) float32 Q-values."""
    x = jnp.asarray(x, jnp.float32)  # mirrors `input.float()` in the torch module
    w1p, b1p, w2p, b2p, w3p, b3p = padded_params
    B, input_n = x.shape
    h_pad = w1p.shape[1]
    out_pad = w3p.shape[1]

    # Batch tiling: multiple of 8 sublanes; 256-row tiles when batch is large
    # enough (full MXU height on v6e/v7x). Double-buffered tiles of
    # 256x128 f32 are ~128 KiB each -> comfortably within v7x's 64 MiB VMEM.
    b_pad = max(_round_up(B, SUBLANE), SUBLANE)
    tb = min(MAX_TB, b_pad)
    b_pad = _round_up(b_pad, tb)
    grid = (b_pad // tb,)

    if b_pad != B:
        x = jnp.pad(x, ((0, b_pad - B), (0, 0)))

    batch_tile = lambda i: (i, 0)   # x / out: new tile per grid step
    resident = lambda i: (0, 0)     # weights / biases: stay resident in VMEM

    flops = 2 * b_pad * (input_n * h_pad + h_pad * h_pad + h_pad * out_pad)
    bytes_accessed = 4 * (
        b_pad * (input_n + out_pad)
        + w1p.size + b1p.size + w2p.size + b2p.size + w3p.size + b3p.size
    )

    out_padded = pl.pallas_call(
        mlp_kernel,
        out_shape=jax.ShapeDtypeStruct((b_pad, out_pad), jnp.float32),
        grid=grid,
        in_specs=[
            pl.BlockSpec((tb, input_n), batch_tile),   # x
            pl.BlockSpec((input_n, h_pad), resident),  # w1
            pl.BlockSpec((1, h_pad), resident),        # b1
            pl.BlockSpec((h_pad, h_pad), resident),    # w2
            pl.BlockSpec((1, h_pad), resident),        # b2
            pl.BlockSpec((h_pad, out_pad), resident),  # w3
            pl.BlockSpec((1, out_pad), resident),      # b3
        ],
        out_specs=pl.BlockSpec((tb, out_pad), batch_tile),
        compiler_params=pltpu.CompilerParams(
            dimension_semantics=("parallel",)),        # 2 TCs on v7x
        cost_estimate=pl.CostEstimate(
            flops=flops, transcendentals=0, bytes_accessed=bytes_accessed),
    )(x, w1p, b1p, w2p, b2p, w3p, b3p)

    return out_padded[:B, :output_n]


def act(s, padded_params, output_n):
    """Greedy action from Q-values (DQN `act`)."""
    # TODO(synk): for single-state inference, fuse the argmax into the kernel
    # (scalar SMEM output) to skip the (B, out) HBM writeback + extra XLA op.
    q = network_forward(s, padded_params, output_n)
    return int(jnp.argmax(q))


def init_params(key, input_n, output_n, hidden=HIDDEN):
    """Deterministic synthetic init (same shapes/semantics as nn.Linear)."""
    ks = jax.random.split(key, 6)

    def linear(kw, kb, fan_in, fan_out):
        bound = 1.0 / jnp.sqrt(jnp.float32(fan_in))
        w = jax.random.uniform(kw, (fan_in, fan_out), jnp.float32, -bound, bound)
        b = jax.random.uniform(kb, (1, fan_out), jnp.float32, -bound, bound)
        return w, b

    w1, b1 = linear(ks[0], ks[1], input_n, hidden)
    w2, b2 = linear(ks[2], ks[3], hidden, hidden)
    w3, b3 = linear(ks[4], ks[5], hidden, output_n)
    return (w1, b1, w2, b2, w3, b3)


def reference_forward(x, params):
    """Pure-JAX reference (unpadded params) for correctness checking."""
    x = jnp.asarray(x, jnp.float32)
    w1, b1, w2, b2, w3, b3 = params
    h = _leaky_relu(x @ w1 + b1)
    h = _leaky_relu(h @ w2 + b2)
    return h @ w3 + b3


if __name__ == "__main__":
    input_n, output_n, batch = 8, 4, 2

    key = jax.random.PRNGKey(0)
    k_params, k_x = jax.random.split(key)
    params = init_params(k_params, input_n, output_n)
    padded_params = pad_params(params)  # pad once, outside the hot path
    x = jax.random.normal(k_x, (batch, input_n), dtype=jnp.float32)

    out = network_forward(x, padded_params, output_n)
    jax.block_until_ready(out)

    ref = reference_forward(x, params)
    assert out.shape == (batch, output_n)
    assert jnp.allclose(out, ref, atol=1e-5, rtol=1e-5)

    # Larger-batch sanity check (exercises the batch grid / 256-row tiles).
    xb = jax.random.normal(jax.random.PRNGKey(1), (300, input_n), jnp.float32)
    outb = network_forward(xb, padded_params, output_n)
    jax.block_until_ready(outb)
    assert outb.shape == (300, output_n)
    assert jnp.allclose(outb, reference_forward(xb, params), atol=1e-4, rtol=1e-4)

    # DQN "act": greedy action from Q-values.
    action = act(x[:1], padded_params, output_n)
    assert 0 <= action < output_n

    print("KERNEL_OK")
</pallas_src>

<mosaic_0001>
module attributes {stable_mosaic.version = 11 : i64} {
  func.func @mlp_kernel(%arg0: i32, %arg1: memref<8x8xf32, #tpu.memory_space<vmem>>, %arg2: memref<8x128xf32, #tpu.memory_space<vmem>>, %arg3: memref<1x128xf32, #tpu.memory_space<vmem>>, %arg4: memref<128x128xf32, #tpu.memory_space<vmem>>, %arg5: memref<1x128xf32, #tpu.memory_space<vmem>>, %arg6: memref<128x128xf32, #tpu.memory_space<vmem>>, %arg7: memref<1x128xf32, #tpu.memory_space<vmem>>, %arg8: memref<8x128xf32, #tpu.memory_space<vmem>>) attributes {dimension_semantics = [#tpu.dimension_semantics<parallel>], iteration_bounds = array<i64: 1>, scalar_prefetch = 0 : i64, scratch_operands = 0 : i64, tpu.core_type = #tpu.core_type<tc>, window_params = [{transform_indices = @transform_0, window_bounds = array<i64: 8, 8>}, {pipeline_mode = #tpu.pipeline_mode<synchronous>, transform_indices = @transform_1, window_bounds = array<i64: 8, 128>}, {pipeline_mode = #tpu.pipeline_mode<synchronous>, transform_indices = @transform_2, window_bounds = array<i64: 1, 128>}, {pipeline_mode = #tpu.pipeline_mode<synchronous>, transform_indices = @transform_3, window_bounds = array<i64: 128, 128>}, {pipeline_mode = #tpu.pipeline_mode<synchronous>, transform_indices = @transform_4, window_bounds = array<i64: 1, 128>}, {pipeline_mode = #tpu.pipeline_mode<synchronous>, transform_indices = @transform_5, window_bounds = array<i64: 128, 128>}, {pipeline_mode = #tpu.pipeline_mode<synchronous>, transform_indices = @transform_6, window_bounds = array<i64: 1, 128>}, {transform_indices = @transform_7, window_bounds = array<i64: 8, 128>}]} {
    %c0 = arith.constant 0 : index
    %c0_0 = arith.constant 0 : index
    %0 = vector.load %arg1[%c0, %c0_0] : memref<8x8xf32, #tpu.memory_space<vmem>>, vector<8x8xf32>
    %c0_1 = arith.constant 0 : index
    %c0_2 = arith.constant 0 : index
    %1 = vector.load %arg2[%c0_1, %c0_2] : memref<8x128xf32, #tpu.memory_space<vmem>>, vector<8x128xf32>
    %cst = arith.constant dense<0.000000e+00> : vector<8x128xf32>
    %2 = tpu.matmul %0, %1, %cst {dimension_numbers = #tpu.dot_dimension_numbers<[1], [0], [0], [1], [0, 0, 1, 1], [], []>} : vector<8x8xf32>, vector<8x128xf32>, vector<8x128xf32> -> vector<8x128xf32>
    %c0_3 = arith.constant 0 : index
    %c0_4 = arith.constant 0 : index
    %3 = vector.load %arg3[%c0_3, %c0_4] : memref<1x128xf32, #tpu.memory_space<vmem>>, vector<1x128xf32>
    %4 = vector.broadcast %3 : vector<1x128xf32> to vector<8x128xf32>
    %5 = arith.addf %2, %4 : vector<8x128xf32>
    %cst_5 = arith.constant 0.000000e+00 : f32
    %6 = vector.broadcast %cst_5 : f32 to vector<8x128xf32>
    %7 = arith.cmpf oge, %5, %6 : vector<8x128xf32>
    %cst_6 = arith.constant 2.000000e-02 : f32
    %8 = vector.broadcast %cst_6 : f32 to vector<8x128xf32>
    %9 = arith.mulf %8, %5 : vector<8x128xf32>
    %10 = arith.select %7, %5, %9 : vector<8x128xi1>, vector<8x128xf32>
    %c0_7 = arith.constant 0 : index
    %c0_8 = arith.constant 0 : index
    %11 = vector.load %arg4[%c0_7, %c0_8] : memref<128x128xf32, #tpu.memory_space<vmem>>, vector<128x128xf32>
    %cst_9 = arith.constant dense<0.000000e+00> : vector<8x128xf32>
    %12 = tpu.matmul %10, %11, %cst_9 {dimension_numbers = #tpu.dot_dimension_numbers<[1], [0], [0], [1], [0, 0, 1, 1], [], []>} : vector<8x128xf32>, vector<128x128xf32>, vector<8x128xf32> -> vector<8x128xf32>
    %c0_10 = arith.constant 0 : index
    %c0_11 = arith.constant 0 : index
    %13 = vector.load %arg5[%c0_10, %c0_11] : memref<1x128xf32, #tpu.memory_space<vmem>>, vector<1x128xf32>
    %14 = vector.broadcast %13 : vector<1x128xf32> to vector<8x128xf32>
    %15 = arith.addf %12, %14 : vector<8x128xf32>
    %cst_12 = arith.constant 0.000000e+00 : f32
    %16 = vector.broadcast %cst_12 : f32 to vector<8x128xf32>
    %17 = arith.cmpf oge, %15, %16 : vector<8x128xf32>
    %cst_13 = arith.constant 2.000000e-02 : f32
    %18 = vector.broadcast %cst_13 : f32 to vector<8x128xf32>
    %19 = arith.mulf %18, %15 : vector<8x128xf32>
    %20 = arith.select %17, %15, %19 : vector<8x128xi1>, vector<8x128xf32>
    %c0_14 = arith.constant 0 : index
    %c0_15 = arith.constant 0 : index
    %21 = vector.load %arg6[%c0_14, %c0_15] : memref<128x128xf32, #tpu.memory_space<vmem>>, vector<128x128xf32>
    %cst_16 = arith.constant dense<0.000000e+00> : vector<8x128xf32>
    %22 = tpu.matmul %20, %21, %cst_16 {dimension_numbers = #tpu.dot_dimension_numbers<[1], [0], [0], [1], [0, 0, 1, 1], [], []>} : vector<8x128xf32>, vector<128x128xf32>, vector<8x128xf32> -> vector<8x128xf32>
    %c0_17 = arith.constant 0 : index
    %c0_18 = arith.constant 0 : index
    %23 = vector.load %arg7[%c0_17, %c0_18] : memref<1x128xf32, #tpu.memory_space<vmem>>, vector<1x128xf32>
    %24 = vector.broadcast %23 : vector<1x128xf32> to vector<8x128xf32>
    %25 = arith.addf %22, %24 : vector<8x128xf32>
    %c0_19 = arith.constant 0 : index
    %c0_20 = arith.constant 0 : index
    %26 = vector.load %arg8[%c0_19, %c0_20] : memref<8x128xf32, #tpu.memory_space<vmem>>, vector<8x128xf32>
    tpu.vector_store %arg8[%c0_19, %c0_20], %25 {strides = array<i32>} : memref<8x128xf32, #tpu.memory_space<vmem>>, vector<8x128xf32>,
    return
  }
  func.func @transform_0(%arg0: i32) -> (i32, i32) {
    %c0_i32 = arith.constant 0 : i32
    %c0_i32_0 = arith.constant 0 : i32
    return %arg0, %c0_i32 : i32, i32
  }
  func.func @transform_1(%arg0: i32) -> (i32, i32) {
    %c0_i32 = arith.constant 0 : i32
    %c0_i32_0 = arith.constant 0 : i32
    %c0_i32_1 = arith.constant 0 : i32
    return %c0_i32, %c0_i32_0 : i32, i32
  }
  func.func @transform_2(%arg0: i32) -> (i32, i32) {
    %c0_i32 = arith.constant 0 : i32
    %c0_i32_0 = arith.constant 0 : i32
    %c0_i32_1 = arith.constant 0 : i32
    return %c0_i32, %c0_i32_0 : i32, i32
  }
  func.func @transform_3(%arg0: i32) -> (i32, i32) {
    %c0_i32 = arith.constant 0 : i32
    %c0_i32_0 = arith.constant 0 : i32
    %c0_i32_1 = arith.constant 0 : i32
    return %c0_i32, %c0_i32_0 : i32, i32
  }
  func.func @transform_4(%arg0: i32) -> (i32, i32) {
    %c0_i32 = arith.constant 0 : i32
    %c0_i32_0 = arith.constant 0 : i32
    %c0_i32_1 = arith.constant 0 : i32
    return %c0_i32, %c0_i32_0 : i32, i32
  }
  func.func @transform_5(%arg0: i32) -> (i32, i32) {
    %c0_i32 = arith.constant 0 : i32
    %c0_i32_0 = arith.constant 0 : i32
    %c0_i32_1 = arith.constant 0 : i32
    return %c0_i32, %c0_i32_0 : i32, i32
  }
  func.func @transform_6(%arg0: i32) -> (i32, i32) {
    %c0_i32 = arith.constant 0 : i32
    %c0_i32_0 = arith.constant 0 : i32
    %c0_i32_1 = arith.constant 0 : i32
    return %c0_i32, %c0_i32_0 : i32, i32
  }
  func.func @transform_7(%arg0: i32) -> (i32, i32) {
    %c0_i32 = arith.constant 0 : i32
    %c0_i32_0 = arith.constant 0 : i32
    return %arg0, %c0_i32 : i32, i32
  }
}

</mosaic_0001>

<llo_original>
// kernel: tpu_custom_call.1
$region0: #{tpu_custom_call.1}
  #allocation0 [shape = 'u32[]', space=smem, size = 0x4, offset = 0x4, fixed_abs, tag = 'smem constant byte address 0x4 - core index']
  #allocation1 [shape = 'u32[72,128]{1,0:T(1,128)}', space=vmem, size = 0x9000, scoped, tag = 'internal scratch']
  %s0 = inlined_call_operand.hbm [shape: f32[8,8], index: 0, kind: input, shape index: {}]
  %s1 = inlined_call_operand.hbm [shape: f32[8,128], index: 1, kind: input, shape index: {}]
  %s2 = inlined_call_operand.vmem [shape: f32[1,128], index: 2, kind: input, shape index: {}]
  %s3 = inlined_call_operand.hbm [shape: f32[128,128], index: 3, kind: input, shape index: {}]
  %s4 = inlined_call_operand.vmem [shape: f32[1,128], index: 4, kind: input, shape index: {}]
  %s5 = inlined_call_operand.hbm [shape: f32[128,128], index: 5, kind: input, shape index: {}]
  %s6 = inlined_call_operand.vmem [shape: f32[1,128], index: 6, kind: input, shape index: {}]
  %s7 = inlined_call_operand.hbm [shape: f32[8,128], index: 7, kind: output, shape index: {}]
  %s8 = sld [smem:[#allocation0]]
  $region54: #{tpu_custom_call.1} parent=0
    _
  %s10 = ssub.s32 1, %s8
  %s11 = scalar_select 0, %s10, %s8
  $region1: #{tpu_custom_call.1} parent=0
    #allocation2 [shape = 'u8[4096]{0}', space=vmem, size = 0x1000, scoped, tag = 'input window, operand 0, single buffered']
    #allocation3 [shape = 's32[1]{0}', space=sflag, size = 0x4, scoped, tag = 'scoped memory for tpu_custom_call.1']
    #allocation4 [shape = 's32[1]{0}', space=sflag, size = 0x4, scoped, tag = 'scoped memory for tpu_custom_call.1']
    #allocation5 [shape = 'u8[4096]{0}', space=vmem, size = 0x1000, scoped, tag = 'input window, operand 1, single buffered']
    #allocation6 [shape = 's32[1]{0}', space=sflag, size = 0x4, scoped, tag = 'scoped memory for tpu_custom_call.1']
    #allocation7 [shape = 'u8[65536]{0}', space=vmem, size = 0x10000, scoped, tag = 'input window, operand 3, single buffered']
    #allocation8 [shape = 'u8[65536]{0}', space=vmem, size = 0x10000, scoped, tag = 'input window, operand 5, single buffered']
    #allocation9 [shape = 's32[1]{0}', space=sflag, size = 0x4, scoped, tag = 'scoped memory for tpu_custom_call.1']
    #allocation10 [shape = 'u8[4096]{0}', space=vmem, size = 0x1000, scoped, tag = 'output window, operand 0, single buffered']
    %12 = vsyncpa [#allocation3], 0
    %13 = vsyncpa [#allocation6], 0
    %14 = vsyncpa [#allocation9], 0
    %15 = vsyncpa [#allocation4], 0
    // Predicated region
    $region2: #{tpu_custom_call.1} parent=1 // pred_check
      _
    $region3: #{tpu_custom_call.1} parent=1 // pred_check_branch
      %17 = sbr.rel (0) target = $region5
    $region4: #{tpu_custom_call.1} parent=1 // pred_region
      %19 = vsyncadd [#allocation3], 0
      %s21 = sshll.u32 %s0, 4
      %s22 = int_to_ptr.hbm [resolvable:$true] %s21
      %s23 = sshll.u32 [#allocation2], 4
      %s24 = int_to_ptr.vmem [resolvable:$true] %s23
      %26 = dma.hbm_to_vmem [thread:$0]  %s22, 128, %s24, [#allocation3]
    $region5: #{tpu_custom_call.1} parent=1 // pred_fallthru
      _
    // Predicated region
    $region6: #{tpu_custom_call.1} parent=1 // pred_check
      _
    $region7: #{tpu_custom_call.1} parent=1 // pred_check_branch
      %28 = sbr.rel (0) target = $region9
    $region8: #{tpu_custom_call.1} parent=1 // pred_region
      %30 = vsyncadd [#allocation6], 0
      %s32 = sshll.u32 %s1, 4
      %s33 = int_to_ptr.hbm [resolvable:$true] %s32
      %s34 = sshll.u32 [#allocation5], 4
      %s35 = int_to_ptr.vmem [resolvable:$true] %s34
      %37 = dma.hbm_to_vmem [thread:$0]  %s33, 128, %s35, [#allocation6]
    $region9: #{tpu_custom_call.1} parent=1 // pred_fallthru
      _
    // Predicated region
    $region10: #{tpu_custom_call.1} parent=1 // pred_check
      _
    $region11: #{tpu_custom_call.1} parent=1 // pred_check_branch
      %39 = sbr.rel (0) target = $region13
    $region12: #{tpu_custom_call.1} parent=1 // pred_region
      _
    $region13: #{tpu_custom_call.1} parent=1 // pred_fallthru
      _
    // Predicated region
    $region14: #{tpu_custom_call.1} parent=1 // pred_check
      _
    $region15: #{tpu_custom_call.1} parent=1 // pred_check_branch
      %41 = sbr.rel (0) target = $region17
    $region16: #{tpu_custom_call.1} parent=1 // pred_region
      %43 = vsyncadd [#allocation6], 0
      %s44 = sshll.u32 %s3, 4
      %s45 = int_to_ptr.hbm [resolvable:$true] %s44
      %s46 = sshll.u32 [#allocation7], 4
      %s47 = int_to_ptr.vmem [resolvable:$true] %s46
      %52 = dma.hbm_to_vmem [thread:$0]  %s45, 2048, %s47, [#allocation6], 128, 128, 8
    $region17: #{tpu_custom_call.1} parent=1 // pred_fallthru
      _
    // Predicated region
    $region18: #{tpu_custom_call.1} parent=1 // pred_check
      _
    $region19: #{tpu_custom_call.1} parent=1 // pred_check_branch
      %54 = sbr.rel (0) target = $region21
    $region20: #{tpu_custom_call.1} parent=1 // pred_region
      _
    $region21: #{tpu_custom_call.1} parent=1 // pred_fallthru
      _
    // Predicated region
    $region22: #{tpu_custom_call.1} parent=1 // pred_check
      _
    $region23: #{tpu_custom_call.1} parent=1 // pred_check_branch
      %56 = sbr.rel (0) target = $region25
    $region24: #{tpu_custom_call.1} parent=1 // pred_region
      %58 = vsyncadd [#allocation9], 0
      %s59 = sshll.u32 %s5, 4
      %s60 = int_to_ptr.hbm [resolvable:$true] %s59
      %s61 = sshll.u32 [#allocation8], 4
      %s62 = int_to_ptr.vmem [resolvable:$true] %s61
      %67 = dma.hbm_to_vmem [thread:$0]  %s60, 2048, %s62, [#allocation9], 128, 128, 8
    $region25: #{tpu_custom_call.1} parent=1 // pred_fallthru
      _
    // Predicated region
    $region26: #{tpu_custom_call.1} parent=1 // pred_check
      _
    $region27: #{tpu_custom_call.1} parent=1 // pred_check_branch
      %69 = sbr.rel (0) target = $region29
    $region28: #{tpu_custom_call.1} parent=1 // pred_region
      _
    $region29: #{tpu_custom_call.1} parent=1 // pred_fallthru
      _
    // Predicated region
    $region30: #{tpu_custom_call.1} parent=1 // pred_check
      _
    $region31: #{tpu_custom_call.1} parent=1 // pred_check_branch
      %71 = sbr.rel (0) target = $region33
    $region32: #{tpu_custom_call.1} parent=1 // pred_region
      %73 = dma.done [#allocation3], 128
    $region33: #{tpu_custom_call.1} parent=1 // pred_fallthru
      _
    // Predicated region
    $region34: #{tpu_custom_call.1} parent=1 // pred_check
      _
    $region35: #{tpu_custom_call.1} parent=1 // pred_check_branch
      %75 = sbr.rel (0) target = $region37
    $region36: #{tpu_custom_call.1} parent=1 // pred_region
      %77 = dma.done [#allocation6], 128
    $region37: #{tpu_custom_call.1} parent=1 // pred_fallthru
      _
    // Predicated region
    $region38: #{tpu_custom_call.1} parent=1 // pred_check
      _
    $region39: #{tpu_custom_call.1} parent=1 // pred_check_branch
      %79 = sbr.rel (0) target = $region41
    $region40: #{tpu_custom_call.1} parent=1 // pred_region
      %81 = dma.done [#allocation6], 2048
    $region41: #{tpu_custom_call.1} parent=1 // pred_fallthru
      _
    // Predicated region
    $region42: #{tpu_custom_call.1} parent=1 // pred_check
      _
    $region43: #{tpu_custom_call.1} parent=1 // pred_check_branch
      %83 = sbr.rel (0) target = $region45
    $region44: #{tpu_custom_call.1} parent=1 // pred_region
      %85 = dma.done [#allocation9], 2048
    $region45: #{tpu_custom_call.1} parent=1 // pred_fallthru
      _
    %v86 = vld [vmem:[#allocation2] sm:$0xff]
    %v87 = vld [vmem:[#allocation5] sm:$0xff]
    %v88 = vld [vmem:[%s2] sm:$0x1]
    %v90 = vperm.slane %v88, 0
    %vm92 = vcmask 64512
    %v94 = vsel %vm92, %v86, 0
    %96 = vmatpush.msra.mxu0 0.0
    %97 = vmatpush.msra.mxu0 0.0
    %98 = vmatpush.msra.mxu0 0.0
    %99 = vmatpush.msra.mxu0 0.0
    %100 = vmatpush.msra.mxu0 0.0
    %101 = vmatpush.msra.mxu0 0.0
    %102 = vmatpush.msra.mxu0 0.0
    %103 = vmatpush.msra.mxu0 0.0
    %104 = vmatpush.msra.mxu0 0.0
    %105 = vmatpush.msra.mxu0 0.0
    %106 = vmatpush.msra.mxu0 0.0
    %107 = vmatpush.msra.mxu0 0.0
    %108 = vmatpush.msra.mxu0 0.0
    %109 = vmatpush.msra.mxu0 0.0
    %110 = vmatpush.msra.mxu0 0.0
    %111 = vmatpush.msra.mxu0 %v87
    %112 = vmatmul.f32.gmra.mxu0 %v94
    %v113 = vpop.f32.mrf.mxu0
    %v114 = vadd.f32 %v90, %v113
    %115 = vdwg.mxu0
    %vm116 = vcmp.ge.f32.partialorder %v114, 0.0
    %v117 = vmul.f32 %v114, 0.02
    %v118 = vsel %vm116, %v114, %v117
    %v119 = vld [vmem:[#allocation7] sm:$0xff]
    %v120 = vld [vmem:[#allocation7 + $0x8] sm:$0xff]
    %v121 = vld [vmem:[#allocation7 + $0x10] sm:$0xff]
    %v122 = vld [vmem:[#allocation7 + $0x18] sm:$0xff]
    %v123 = vld [vmem:[#allocation7 + $0x20] sm:$0xff]
    %v124 = vld [vmem:[#allocation7 + $0x28] sm:$0xff]
    %v125 = vld [vmem:[#allocation7 + $0x30] sm:$0xff]
    %v126 = vld [vmem:[#allocation7 + $0x38] sm:$0xff]
    %v127 = vld [vmem:[#allocation7 + $0x40] sm:$0xff]
    %v128 = vld [vmem:[#allocation7 + $0x48] sm:$0xff]
    %v129 = vld [vmem:[#allocation7 + $0x50] sm:$0xff]
    %v130 = vld [vmem:[#allocation7 + $0x58] sm:$0xff]
    %v131 = vld [vmem:[#allocation7 + $0x60] sm:$0xff]
    %v132 = vld [vmem:[#allocation7 + $0x68] sm:$0xff]
    %v133 = vld [vmem:[#allocation7 + $0x70] sm:$0xff]
    %v134 = vld [vmem:[#allocation7 + $0x78] sm:$0xff]
    %v135 = vld [vmem:[%s4] sm:$0x1]
    %v137 = vperm.slane %v135, 0
    %139 = vmatpush.msra.mxu0 %v134
    %140 = vmatpush.msra.mxu0 %v133
    %141 = vmatpush.msra.mxu0 %v132
    %142 = vmatpush.msra.mxu0 %v131
    %143 = vmatpush.msra.mxu0 %v130
    %144 = vmatpush.msra.mxu0 %v129
    %145 = vmatpush.msra.mxu0 %v128
    %146 = vmatpush.msra.mxu0 %v127
    %147 = vmatpush.msra.mxu0 %v126
    %148 = vmatpush.msra.mxu0 %v125
    %149 = vmatpush.msra.mxu0 %v124
    %150 = vmatpush.msra.mxu0 %v123
    %151 = vmatpush.msra.mxu0 %v122
    %152 = vmatpush.msra.mxu0 %v121
    %153 = vmatpush.msra.mxu0 %v120
    %154 = vmatpush.msra.mxu0 %v119
    %155 = vmatmul.f32.gmra.mxu0 %v118
    %v156 = vpop.f32.mrf.mxu0
    %v157 = vadd.f32 %v137, %v156
    %158 = vdwg.mxu0
    %vm159 = vcmp.ge.f32.partialorder %v157, 0.0
    %v160 = vmul.f32 %v157, 0.02
    %v161 = vsel %vm159, %v157, %v160
    %v162 = vld [vmem:[#allocation8] sm:$0xff]
    %v163 = vld [vmem:[#allocation8 + $0x8] sm:$0xff]
    %v164 = vld [vmem:[#allocation8 + $0x10] sm:$0xff]
    %v165 = vld [vmem:[#allocation8 + $0x18] sm:$0xff]
    %v166 = vld [vmem:[#allocation8 + $0x20] sm:$0xff]
    %v167 = vld [vmem:[#allocation8 + $0x28] sm:$0xff]
    %v168 = vld [vmem:[#allocation8 + $0x30] sm:$0xff]
    %v169 = vld [vmem:[#allocation8 + $0x38] sm:$0xff]
    %v170 = vld [vmem:[#allocation8 + $0x40] sm:$0xff]
    %v171 = vld [vmem:[#allocation8 + $0x48] sm:$0xff]
    %v172 = vld [vmem:[#allocation8 + $0x50] sm:$0xff]
    %v173 = vld [vmem:[#allocation8 + $0x58] sm:$0xff]
    %v174 = vld [vmem:[#allocation8 + $0x60] sm:$0xff]
    %v175 = vld [vmem:[#allocation8 + $0x68] sm:$0xff]
    %v176 = vld [vmem:[#allocation8 + $0x70] sm:$0xff]
    %v177 = vld [vmem:[#allocation8 + $0x78] sm:$0xff]
    %v178 = vld [vmem:[%s6] sm:$0x1]
    %v180 = vperm.slane %v178, 0
    %182 = vmatpush.msra.mxu0 %v177
    %183 = vmatpush.msra.mxu0 %v176
    %184 = vmatpush.msra.mxu0 %v175
    %185 = vmatpush.msra.mxu0 %v174
    %186 = vmatpush.msra.mxu0 %v173
    %187 = vmatpush.msra.mxu0 %v172
    %188 = vmatpush.msra.mxu0 %v171
    %189 = vmatpush.msra.mxu0 %v170
    %190 = vmatpush.msra.mxu0 %v169
    %191 = vmatpush.msra.mxu0 %v168
    %192 = vmatpush.msra.mxu0 %v167
    %193 = vmatpush.msra.mxu0 %v166
    %194 = vmatpush.msra.mxu0 %v165
    %195 = vmatpush.msra.mxu0 %v164
    %196 = vmatpush.msra.mxu0 %v163
    %197 = vmatpush.msra.mxu0 %v162
    %198 = vmatmul.f32.gmra.mxu0 %v161
    %v199 = vpop.f32.mrf.mxu0
    %v200 = vadd.f32 %v180, %v199
    %201 = vdwg.mxu0
    %202 = vst [vmem:[#allocation10] sm:$0xff] %v200
    // Predicated region
    $region46: #{tpu_custom_call.1} parent=1 // pred_check
      _
    $region47: #{tpu_custom_call.1} parent=1 // pred_check_branch
      %204 = sbr.rel (0) target = $region49
    $region48: #{tpu_custom_call.1} parent=1 // pred_region
      %206 = vsyncadd [#allocation4], 0
      %s208 = sshll.u32 [#allocation10], 4
      %s209 = int_to_ptr.vmem [resolvable:$true] %s208
      %s210 = sshll.u32 %s7, 4
      %s211 = int_to_ptr.hbm [resolvable:$true] %s210
      %213 = dma.vmem_to_hbm [thread:$0]  %s209, 128, %s211, [#allocation4]
    $region49: #{tpu_custom_call.1} parent=1 // pred_fallthru
      _
    // Predicated region
    $region50: #{tpu_custom_call.1} parent=1 // pred_check
      _
    $region51: #{tpu_custom_call.1} parent=1 // pred_check_branch
      %215 = sbr.rel (0) target = $region53
    $region52: #{tpu_custom_call.1} parent=1 // pred_region
      %217 = dma.done [#allocation4], 128
    $region53: #{tpu_custom_call.1} parent=1 // pred_fallthru
      _
    %218 = vsyncpa [#allocation3], 1
    %219 = vsyncpa [#allocation6], 1
    %220 = vsyncpa [#allocation9], 1
    %221 = vsyncpa [#allocation4], 1

</llo_original>
